<compile_context>
chip_gen: v6e
topology: v6e:2x2x1
jax: 0.10.0
libtpu: 0.0.40
codegen_flags: <defaults>
</compile_context>

<pallas_src>
import math

import jax
import jax.numpy as jnp
from jax.experimental import pallas as pl
from jax.experimental.pallas import tpu as pltpu

_EPS = 1e-6
_ACT_LIMIT = 1.0
_LOG_2PI = math.log(2.0 * math.pi)
_LOG_2 = math.log(2.0)
_LANES = 128


def _gmm_logprob_kernel(c_ref, mu_ref, inv_std_ref, actions_ref, out_ref):
    # c_ref       : SMEM (K,)    pre-folded per-component constants
    #               c_k = -sum_a log_std[k,a] - 0.5*A*log(2*pi) + log_softmax(logits)[k]
    # mu_ref      : SMEM (K*A,)  mu[k, a] at flat index k*A + a
    # inv_std_ref : SMEM (K*A,)  1/std[k, a] at flat index k*A + a
    # actions_ref : VMEM (A, S, 128)   batch packed on (sublane, lane)
    # out_ref     : VMEM (S, 128)
    A = actions_ref.shape[0]
    K = c_ref.shape[0]

    # --- unsquash + tanh-squash correction via two shared logs per action dim ---
    u = []
    corr = None
    for a in range(A):                                   # A is tiny (2): unrolled
        xa = actions_ref[a] * (1.0 / _ACT_LIMIT)         # (S, 128)
        ca = jnp.clip(xa, -1.0 + _EPS, 1.0 - _EPS)
        l1 = jnp.log(1.0 + ca)                           # clip keeps both args > 0
        l2 = jnp.log(1.0 - ca)
        u.append(0.5 * (l1 - l2))                        # == arctanh(ca)
        la = l1 + l2                                     # == 2*(log2 - u - softplus(-2u))
        corr = la if corr is None else corr + la

    # --- per-component log-probs (normalizers / mixture weights folded in c_k) ---
    lp = []
    for k in range(K):                                   # K is tiny (5): unrolled
        q = None
        for a in range(A):
            z = (u[a] - mu_ref[k * A + a]) * inv_std_ref[k * A + a]
            zz = z * z
            q = zz if q is None else q + zz
        lp.append(c_ref[k] - 0.5 * q)                    # (S, 128)

    # --- max-then-sum logsumexp over K (independent exps -> EUP pipelining) ---
    m = lp[0]
    for k in range(1, K):
        m = jnp.maximum(m, lp[k])
    s = jnp.exp(lp[0] - m)
    for k in range(1, K):
        s = s + jnp.exp(lp[k] - m)

    out_ref[...] = (m + jnp.log(s)) - corr


def simple_gmm_log_prob(actions, mu, log_std, logits, *, block_rows=2048):
    """actions: (B, A) f32; mu/log_std: (K, A); logits: (K,). Returns (B,) f32."""
    B, A = actions.shape
    K = mu.shape[0]

    # --- pre-fold per-component constants on the host/XLA side (tiny) ---
    log_std_f = log_std.astype(jnp.float32)
    log_mix = jax.nn.log_softmax(logits.astype(jnp.float32))                 # (K,)
    c = (-jnp.sum(log_std_f, axis=-1) - 0.5 * A * _LOG_2PI + log_mix)        # (K,)
    c = c.astype(jnp.float32)
    mu_flat = mu.astype(jnp.float32).reshape(-1)                             # (K*A,)
    inv_std_flat = jnp.exp(-log_std_f).reshape(-1)                           # (K*A,)

    # --- pack batch densely onto (sublanes, lanes): rows of 128 batch elems ---
    R = pl.cdiv(B, _LANES)                       # number of 128-wide batch rows
    block_rows = max(8, (int(block_rows) // 8) * 8)
    S = min(block_rows, ((R + 7) // 8) * 8)
    if R > 8:
        # Prefer >= 2 grid blocks so v7x's second TensorCore gets work; the
        # per-step overhead (~0.35 us) is negligible at these tile sizes.
        S = min(S, ((pl.cdiv(R, 2) + 7) // 8) * 8)
    S = max(8, min((S // 8) * 8, 8192))          # hard cap keeps v7x VMEM happy
    n_blocks = pl.cdiv(R, S)
    Rp = n_blocks * S
    Bp = Rp * _LANES

    # TODO(synk): in a real pipeline, fuse this transpose/pack into the upstream
    # producer of `actions` instead of paying a standalone XLA pass over HBM.
    actions_t = actions.astype(jnp.float32).T                                # (A, B)
    if Bp != B:
        actions_t = jnp.pad(actions_t, ((0, 0), (0, Bp - B)))                # zeros are safe
    actions_t = actions_t.reshape(A, Rp, _LANES)

    # VMEM budget: double-buffered action tile + output tile (+ slack).
    a_block_bytes = A * S * _LANES * 4
    o_block_bytes = S * _LANES * 4
    vmem_bytes = 2 * (a_block_bytes + o_block_bytes) + (4 << 20)
    vmem_bytes = int(min(max(vmem_bytes, 16 << 20), 64 << 20))

    # Advisory cost hint (kernel is EUP/transcendental dominated).
    transcendentals = Bp * (2 * A + K + 1)
    flops = Bp * (8 * A + K * (4 * A + 3) + 3 * K + 4)
    bytes_accessed = (A + 1) * 4 * Bp + 4 * (K + 2 * K * A)

    out = pl.pallas_call(
        _gmm_logprob_kernel,
        out_shape=jax.ShapeDtypeStruct((Rp, _LANES), jnp.float32),
        grid=(n_blocks,),
        in_specs=[
            pl.BlockSpec(memory_space=pltpu.MemorySpace.SMEM),    # c       (K,)
            pl.BlockSpec(memory_space=pltpu.MemorySpace.SMEM),    # mu      (K*A,)
            pl.BlockSpec(memory_space=pltpu.MemorySpace.SMEM),    # inv_std (K*A,)
            pl.BlockSpec((A, S, _LANES), lambda i: (0, i, 0)),    # actions tile
        ],
        out_specs=pl.BlockSpec((S, _LANES), lambda i: (i, 0)),
        compiler_params=pltpu.CompilerParams(
            dimension_semantics=("parallel",),
            vmem_limit_bytes=vmem_bytes),
        cost_estimate=pl.CostEstimate(
            flops=int(flops),
            transcendentals=int(transcendentals),
            bytes_accessed=int(bytes_accessed)),
    )(c, mu_flat, inv_std_flat, actions_t)
    return out.reshape(Bp)[:B]


def _reference_log_prob(actions, mu, log_std, logits):
    """Pure-JAX reference matching the PyTorch forward()."""
    clipped = jnp.clip(actions / _ACT_LIMIT, -1.0 + _EPS, 1.0 - _EPS)
    u = jnp.arctanh(clipped)                                       # (B, A)
    std = jnp.exp(log_std)
    z = (u[:, None, :] - mu[None, :, :]) / std[None, :, :]         # (B, K, A)
    comp_lp = jnp.sum(-0.5 * z * z - log_std[None, :, :] - 0.5 * _LOG_2PI, axis=-1)
    log_mix = jax.nn.log_softmax(logits)                           # (K,)
    gmm_lp = jax.scipy.special.logsumexp(comp_lp + log_mix[None, :], axis=-1)
    correction = jnp.sum(2.0 * (_LOG_2 - u - jax.nn.softplus(-2.0 * u)), axis=-1)
    return gmm_lp - correction


if __name__ == "__main__":
    num_components = 5
    act_dim = 2
    batch = 8

    key = jax.random.PRNGKey(0)
    k_logits, k_mu, k_log_std, k_act, k_act_big = jax.random.split(key, 5)

    # Deterministic "randn" parameter init (mirrors nn.Parameter(torch.randn(...))).
    logits = jax.random.normal(k_logits, (num_components,), dtype=jnp.float32)
    mu = jax.random.normal(k_mu, (num_components, act_dim), dtype=jnp.float32)
    log_std = jax.random.normal(k_log_std, (num_components, act_dim), dtype=jnp.float32)

    # Tiny case (grid = 1, padded to one (8,128) tile).
    actions = jax.random.normal(k_act, (batch, act_dim), dtype=jnp.float32)
    log_prob = jax.block_until_ready(simple_gmm_log_prob(actions, mu, log_std, logits))
    ref = _reference_log_prob(actions, mu, log_std, logits)
    assert jnp.allclose(log_prob, ref, atol=1e-4, rtol=1e-4), (log_prob, ref)

    # Larger case exercising batch tiling (grid > 1) + padding slice-off.
    actions_big = jax.random.normal(k_act_big, (2100, act_dim), dtype=jnp.float32)
    log_prob_big = jax.block_until_ready(
        simple_gmm_log_prob(actions_big, mu, log_std, logits, block_rows=8))
    ref_big = _reference_log_prob(actions_big, mu, log_std, logits)
    assert jnp.allclose(log_prob_big, ref_big, atol=1e-4, rtol=1e-4)

    # bc_loss = -log_prob.mean() (glue, outside the kernel)
    bc_loss = -jnp.mean(log_prob)
    jax.block_until_ready(bc_loss)

    print("KERNEL_OK")
</pallas_src>

<mosaic_0001>
module attributes {stable_mosaic.version = 11 : i64} {
  func.func @_gmm_logprob_kernel(%arg0: i32, %arg1: memref<5xf32, #tpu.memory_space<smem>>, %arg2: memref<10xf32, #tpu.memory_space<smem>>, %arg3: memref<10xf32, #tpu.memory_space<smem>>, %arg4: memref<2x8x128xf32, #tpu.memory_space<vmem>>, %arg5: memref<8x128xf32, #tpu.memory_space<vmem>>) attributes {dimension_semantics = [#tpu.dimension_semantics<parallel>], iteration_bounds = array<i64: 1>, scalar_prefetch = 0 : i64, scratch_operands = 0 : i64, tpu.core_type = #tpu.core_type<tc>, window_params = [{transform_indices = @transform_0, window_bounds = array<i64: 5>}, {transform_indices = @transform_1, window_bounds = array<i64: 10>}, {transform_indices = @transform_2, window_bounds = array<i64: 10>}, {transform_indices = @transform_3, window_bounds = array<i64: 2, 8, 128>}, {transform_indices = @transform_4, window_bounds = array<i64: 8, 128>}]} {
    %c0 = arith.constant 0 : index
    %c0_0 = arith.constant 0 : index
    %c0_1 = arith.constant 0 : index
    %0 = vector.load %arg4[%c0, %c0_0, %c0_1] : memref<2x8x128xf32, #tpu.memory_space<vmem>>, vector<1x8x128xf32>
    %1 = vector.shape_cast %0 : vector<1x8x128xf32> to vector<8x128xf32>
    %cst = arith.constant 1.000000e+00 : f32
    %2 = vector.broadcast %cst : f32 to vector<8x128xf32>
    %3 = arith.mulf %1, %2 : vector<8x128xf32>
    %cst_2 = arith.constant -0.999998986 : f32
    %cst_3 = arith.constant 0.999998986 : f32
    %4 = vector.broadcast %cst_2 : f32 to vector<8x128xf32>
    %5 = arith.maximumf %4, %3 : vector<8x128xf32>
    %6 = vector.broadcast %cst_3 : f32 to vector<8x128xf32>
    %7 = arith.minimumf %6, %5 : vector<8x128xf32>
    %cst_4 = arith.constant 1.000000e+00 : f32
    %8 = vector.broadcast %cst_4 : f32 to vector<8x128xf32>
    %9 = arith.addf %8, %7 : vector<8x128xf32>
    %10 = math.log %9 : vector<8x128xf32>
    %cst_5 = arith.constant 1.000000e+00 : f32
    %11 = vector.broadcast %cst_5 : f32 to vector<8x128xf32>
    %12 = arith.subf %11, %7 : vector<8x128xf32>
    %13 = math.log %12 : vector<8x128xf32>
    %14 = arith.subf %10, %13 : vector<8x128xf32>
    %cst_6 = arith.constant 5.000000e-01 : f32
    %15 = vector.broadcast %cst_6 : f32 to vector<8x128xf32>
    %16 = arith.mulf %15, %14 : vector<8x128xf32>
    %17 = arith.addf %10, %13 : vector<8x128xf32>
    %c1 = arith.constant 1 : index
    %c0_7 = arith.constant 0 : index
    %c0_8 = arith.constant 0 : index
    %18 = vector.load %arg4[%c1, %c0_7, %c0_8] : memref<2x8x128xf32, #tpu.memory_space<vmem>>, vector<1x8x128xf32>
    %19 = vector.shape_cast %18 : vector<1x8x128xf32> to vector<8x128xf32>
    %cst_9 = arith.constant 1.000000e+00 : f32
    %20 = vector.broadcast %cst_9 : f32 to vector<8x128xf32>
    %21 = arith.mulf %19, %20 : vector<8x128xf32>
    %cst_10 = arith.constant -0.999998986 : f32
    %cst_11 = arith.constant 0.999998986 : f32
    %22 = vector.broadcast %cst_10 : f32 to vector<8x128xf32>
    %23 = arith.maximumf %22, %21 : vector<8x128xf32>
    %24 = vector.broadcast %cst_11 : f32 to vector<8x128xf32>
    %25 = arith.minimumf %24, %23 : vector<8x128xf32>
    %cst_12 = arith.constant 1.000000e+00 : f32
    %26 = vector.broadcast %cst_12 : f32 to vector<8x128xf32>
    %27 = arith.addf %26, %25 : vector<8x128xf32>
    %28 = math.log %27 : vector<8x128xf32>
    %cst_13 = arith.constant 1.000000e+00 : f32
    %29 = vector.broadcast %cst_13 : f32 to vector<8x128xf32>
    %30 = arith.subf %29, %25 : vector<8x128xf32>
    %31 = math.log %30 : vector<8x128xf32>
    %32 = arith.subf %28, %31 : vector<8x128xf32>
    %cst_14 = arith.constant 5.000000e-01 : f32
    %33 = vector.broadcast %cst_14 : f32 to vector<8x128xf32>
    %34 = arith.mulf %33, %32 : vector<8x128xf32>
    %35 = arith.addf %28, %31 : vector<8x128xf32>
    %36 = arith.addf %17, %35 : vector<8x128xf32>
    %c0_15 = arith.constant 0 : index
    %37 = memref.load %arg2[%c0_15] : memref<10xf32, #tpu.memory_space<smem>>
    %38 = vector.broadcast %37 : f32 to vector<8x128xf32>
    %39 = arith.subf %16, %38 : vector<8x128xf32>
    %c0_16 = arith.constant 0 : index
    %40 = memref.load %arg3[%c0_16] : memref<10xf32, #tpu.memory_space<smem>>
    %41 = vector.broadcast %40 : f32 to vector<8x128xf32>
    %42 = arith.mulf %39, %41 : vector<8x128xf32>
    %43 = arith.mulf %42, %42 : vector<8x128xf32>
    %c1_17 = arith.constant 1 : index
    %44 = memref.load %arg2[%c1_17] : memref<10xf32, #tpu.memory_space<smem>>
    %45 = vector.broadcast %44 : f32 to vector<8x128xf32>
    %46 = arith.subf %34, %45 : vector<8x128xf32>
    %c1_18 = arith.constant 1 : index
    %47 = memref.load %arg3[%c1_18] : memref<10xf32, #tpu.memory_space<smem>>
    %48 = vector.broadcast %47 : f32 to vector<8x128xf32>
    %49 = arith.mulf %46, %48 : vector<8x128xf32>
    %50 = arith.mulf %49, %49 : vector<8x128xf32>
    %51 = arith.addf %43, %50 : vector<8x128xf32>
    %c0_19 = arith.constant 0 : index
    %52 = memref.load %arg1[%c0_19] : memref<5xf32, #tpu.memory_space<smem>>
    %cst_20 = arith.constant 5.000000e-01 : f32
    %53 = vector.broadcast %cst_20 : f32 to vector<8x128xf32>
    %54 = arith.mulf %53, %51 : vector<8x128xf32>
    %55 = vector.broadcast %52 : f32 to vector<8x128xf32>
    %56 = arith.subf %55, %54 : vector<8x128xf32>
    %c2 = arith.constant 2 : index
    %57 = memref.load %arg2[%c2] : memref<10xf32, #tpu.memory_space<smem>>
    %58 = vector.broadcast %57 : f32 to vector<8x128xf32>
    %59 = arith.subf %16, %58 : vector<8x128xf32>
    %c2_21 = arith.constant 2 : index
    %60 = memref.load %arg3[%c2_21] : memref<10xf32, #tpu.memory_space<smem>>
    %61 = vector.broadcast %60 : f32 to vector<8x128xf32>
    %62 = arith.mulf %59, %61 : vector<8x128xf32>
    %63 = arith.mulf %62, %62 : vector<8x128xf32>
    %c3 = arith.constant 3 : index
    %64 = memref.load %arg2[%c3] : memref<10xf32, #tpu.memory_space<smem>>
    %65 = vector.broadcast %64 : f32 to vector<8x128xf32>
    %66 = arith.subf %34, %65 : vector<8x128xf32>
    %c3_22 = arith.constant 3 : index
    %67 = memref.load %arg3[%c3_22] : memref<10xf32, #tpu.memory_space<smem>>
    %68 = vector.broadcast %67 : f32 to vector<8x128xf32>
    %69 = arith.mulf %66, %68 : vector<8x128xf32>
    %70 = arith.mulf %69, %69 : vector<8x128xf32>
    %71 = arith.addf %63, %70 : vector<8x128xf32>
    %c1_23 = arith.constant 1 : index
    %72 = memref.load %arg1[%c1_23] : memref<5xf32, #tpu.memory_space<smem>>
    %cst_24 = arith.constant 5.000000e-01 : f32
    %73 = vector.broadcast %cst_24 : f32 to vector<8x128xf32>
    %74 = arith.mulf %73, %71 : vector<8x128xf32>
    %75 = vector.broadcast %72 : f32 to vector<8x128xf32>
    %76 = arith.subf %75, %74 : vector<8x128xf32>
    %c4 = arith.constant 4 : index
    %77 = memref.load %arg2[%c4] : memref<10xf32, #tpu.memory_space<smem>>
    %78 = vector.broadcast %77 : f32 to vector<8x128xf32>
    %79 = arith.subf %16, %78 : vector<8x128xf32>
    %c4_25 = arith.constant 4 : index
    %80 = memref.load %arg3[%c4_25] : memref<10xf32, #tpu.memory_space<smem>>
    %81 = vector.broadcast %80 : f32 to vector<8x128xf32>
    %82 = arith.mulf %79, %81 : vector<8x128xf32>
    %83 = arith.mulf %82, %82 : vector<8x128xf32>
    %c5 = arith.constant 5 : index
    %84 = memref.load %arg2[%c5] : memref<10xf32, #tpu.memory_space<smem>>
    %85 = vector.broadcast %84 : f32 to vector<8x128xf32>
    %86 = arith.subf %34, %85 : vector<8x128xf32>
    %c5_26 = arith.constant 5 : index
    %87 = memref.load %arg3[%c5_26] : memref<10xf32, #tpu.memory_space<smem>>
    %88 = vector.broadcast %87 : f32 to vector<8x128xf32>
    %89 = arith.mulf %86, %88 : vector<8x128xf32>
    %90 = arith.mulf %89, %89 : vector<8x128xf32>
    %91 = arith.addf %83, %90 : vector<8x128xf32>
    %c2_27 = arith.constant 2 : index
    %92 = memref.load %arg1[%c2_27] : memref<5xf32, #tpu.memory_space<smem>>
    %cst_28 = arith.constant 5.000000e-01 : f32
    %93 = vector.broadcast %cst_28 : f32 to vector<8x128xf32>
    %94 = arith.mulf %93, %91 : vector<8x128xf32>
    %95 = vector.broadcast %92 : f32 to vector<8x128xf32>
    %96 = arith.subf %95, %94 : vector<8x128xf32>
    %c6 = arith.constant 6 : index
    %97 = memref.load %arg2[%c6] : memref<10xf32, #tpu.memory_space<smem>>
    %98 = vector.broadcast %97 : f32 to vector<8x128xf32>
    %99 = arith.subf %16, %98 : vector<8x128xf32>
    %c6_29 = arith.constant 6 : index
    %100 = memref.load %arg3[%c6_29] : memref<10xf32, #tpu.memory_space<smem>>
    %101 = vector.broadcast %100 : f32 to vector<8x128xf32>
    %102 = arith.mulf %99, %101 : vector<8x128xf32>
    %103 = arith.mulf %102, %102 : vector<8x128xf32>
    %c7 = arith.constant 7 : index
    %104 = memref.load %arg2[%c7] : memref<10xf32, #tpu.memory_space<smem>>
    %105 = vector.broadcast %104 : f32 to vector<8x128xf32>
    %106 = arith.subf %34, %105 : vector<8x128xf32>
    %c7_30 = arith.constant 7 : index
    %107 = memref.load %arg3[%c7_30] : memref<10xf32, #tpu.memory_space<smem>>
    %108 = vector.broadcast %107 : f32 to vector<8x128xf32>
    %109 = arith.mulf %106, %108 : vector<8x128xf32>
    %110 = arith.mulf %109, %109 : vector<8x128xf32>
    %111 = arith.addf %103, %110 : vector<8x128xf32>
    %c3_31 = arith.constant 3 : index
    %112 = memref.load %arg1[%c3_31] : memref<5xf32, #tpu.memory_space<smem>>
    %cst_32 = arith.constant 5.000000e-01 : f32
    %113 = vector.broadcast %cst_32 : f32 to vector<8x128xf32>
    %114 = arith.mulf %113, %111 : vector<8x128xf32>
    %115 = vector.broadcast %112 : f32 to vector<8x128xf32>
    %116 = arith.subf %115, %114 : vector<8x128xf32>
    %c8 = arith.constant 8 : index
    %117 = memref.load %arg2[%c8] : memref<10xf32, #tpu.memory_space<smem>>
    %118 = vector.broadcast %117 : f32 to vector<8x128xf32>
    %119 = arith.subf %16, %118 : vector<8x128xf32>
    %c8_33 = arith.constant 8 : index
    %120 = memref.load %arg3[%c8_33] : memref<10xf32, #tpu.memory_space<smem>>
    %121 = vector.broadcast %120 : f32 to vector<8x128xf32>
    %122 = arith.mulf %119, %121 : vector<8x128xf32>
    %123 = arith.mulf %122, %122 : vector<8x128xf32>
    %c9 = arith.constant 9 : index
    %124 = memref.load %arg2[%c9] : memref<10xf32, #tpu.memory_space<smem>>
    %125 = vector.broadcast %124 : f32 to vector<8x128xf32>
    %126 = arith.subf %34, %125 : vector<8x128xf32>
    %c9_34 = arith.constant 9 : index
    %127 = memref.load %arg3[%c9_34] : memref<10xf32, #tpu.memory_space<smem>>
    %128 = vector.broadcast %127 : f32 to vector<8x128xf32>
    %129 = arith.mulf %126, %128 : vector<8x128xf32>
    %130 = arith.mulf %129, %129 : vector<8x128xf32>
    %131 = arith.addf %123, %130 : vector<8x128xf32>
    %c4_35 = arith.constant 4 : index
    %132 = memref.load %arg1[%c4_35] : memref<5xf32, #tpu.memory_space<smem>>
    %cst_36 = arith.constant 5.000000e-01 : f32
    %133 = vector.broadcast %cst_36 : f32 to vector<8x128xf32>
    %134 = arith.mulf %133, %131 : vector<8x128xf32>
    %135 = vector.broadcast %132 : f32 to vector<8x128xf32>
    %136 = arith.subf %135, %134 : vector<8x128xf32>
    %137 = arith.maximumf %56, %76 : vector<8x128xf32>
    %138 = arith.maximumf %137, %96 : vector<8x128xf32>
    %139 = arith.maximumf %138, %116 : vector<8x128xf32>
    %140 = arith.maximumf %139, %136 : vector<8x128xf32>
    %141 = arith.subf %56, %140 : vector<8x128xf32>
    %142 = math.exp %141 : vector<8x128xf32>
    %143 = arith.subf %76, %140 : vector<8x128xf32>
    %144 = math.exp %143 : vector<8x128xf32>
    %145 = arith.addf %142, %144 : vector<8x128xf32>
    %146 = arith.subf %96, %140 : vector<8x128xf32>
    %147 = math.exp %146 : vector<8x128xf32>
    %148 = arith.addf %145, %147 : vector<8x128xf32>
    %149 = arith.subf %116, %140 : vector<8x128xf32>
    %150 = math.exp %149 : vector<8x128xf32>
    %151 = arith.addf %148, %150 : vector<8x128xf32>
    %152 = arith.subf %136, %140 : vector<8x128xf32>
    %153 = math.exp %152 : vector<8x128xf32>
    %154 = arith.addf %151, %153 : vector<8x128xf32>
    %155 = math.log %154 : vector<8x128xf32>
    %156 = arith.addf %140, %155 : vector<8x128xf32>
    %157 = arith.subf %156, %36 : vector<8x128xf32>
    %c0_37 = arith.constant 0 : index
    %c0_38 = arith.constant 0 : index
    %158 = vector.load %arg5[%c0_37, %c0_38] : memref<8x128xf32, #tpu.memory_space<vmem>>, vector<8x128xf32>
    tpu.vector_store %arg5[%c0_37, %c0_38], %157 {strides = array<i32>} : memref<8x128xf32, #tpu.memory_space<vmem>>, vector<8x128xf32>,
    return
  }
  func.func @transform_0(%arg0: i32) -> i32 {
    %c0_i32 = arith.constant 0 : i32
    %c0_i32_0 = arith.constant 0 : i32
    return %c0_i32 : i32
  }
  func.func @transform_1(%arg0: i32) -> i32 {
    %c0_i32 = arith.constant 0 : i32
    %c0_i32_0 = arith.constant 0 : i32
    return %c0_i32 : i32
  }
  func.func @transform_2(%arg0: i32) -> i32 {
    %c0_i32 = arith.constant 0 : i32
    %c0_i32_0 = arith.constant 0 : i32
    return %c0_i32 : i32
  }
  func.func @transform_3(%arg0: i32) -> (i32, i32, i32) {
    %c0_i32 = arith.constant 0 : i32
    %c0_i32_0 = arith.constant 0 : i32
    %c0_i32_1 = arith.constant 0 : i32
    return %c0_i32, %arg0, %c0_i32_0 : i32, i32, i32
  }
  func.func @transform_4(%arg0: i32) -> (i32, i32) {
    %c0_i32 = arith.constant 0 : i32
    %c0_i32_0 = arith.constant 0 : i32
    return %arg0, %c0_i32 : i32, i32
  }
}

</mosaic_0001>

<llo_original>
// kernel: tpu_custom_call.1
$region0: #{tpu_custom_call.1}
  #allocation0 [shape = 'u32[]', space=smem, size = 0x4, offset = 0x4, fixed_abs, tag = 'smem constant byte address 0x4 - core index']
  #allocation1 [shape = 'u32[144,128]{1,0:T(1,128)}', space=vmem, size = 0x12000, scoped, tag = 'internal scratch']
  %s0 = inlined_call_operand.hbm [shape: f32[5], index: 0, kind: input, shape index: {}]
  %s1 = inlined_call_operand.vmem [shape: f32[10], index: 1, kind: input, shape index: {}]
  %s2 = inlined_call_operand.vmem [shape: f32[10], index: 2, kind: input, shape index: {}]
  %s3 = inlined_call_operand.hbm [shape: f32[2,8,128], index: 3, kind: input, shape index: {}]
  %s4 = inlined_call_operand.hbm [shape: f32[8,128], index: 4, kind: output, shape index: {}]
  %s5 = sld [smem:[#allocation0]]
  $region42: #{tpu_custom_call.1} parent=0
    _
  %s7 = ssub.s32 1, %s5
  %s8 = scalar_select 0, %s7, %s5
  $region1: #{tpu_custom_call.1} parent=0
    #allocation2 [shape = 'u8[512]{0}', space=smem, size = 0x200, scoped, tag = 'input window, operand 0, single buffered']
    #allocation3 [shape = 's32[1]{0}', space=sflag, size = 0x4, scoped, tag = 'scoped memory for tpu_custom_call.1']
    #allocation4 [shape = 's32[1]{0}', space=sflag, size = 0x4, scoped, tag = 'scoped memory for tpu_custom_call.1']
    #allocation5 [shape = 's32[1]{0}', space=sflag, size = 0x4, scoped, tag = 'scoped memory for tpu_custom_call.1']
    #allocation6 [shape = 's32[1]{0}', space=sflag, size = 0x4, scoped, tag = 'scoped memory for tpu_custom_call.1']
    #allocation7 [shape = 'u8[512]{0}', space=smem, size = 0x200, scoped, tag = 'input window, operand 1, single buffered']
    #allocation8 [shape = 'u8[512]{0}', space=smem, size = 0x200, scoped, tag = 'input window, operand 2, single buffered']
    #allocation9 [shape = 's32[1]{0}', space=sflag, size = 0x4, scoped, tag = 'scoped memory for tpu_custom_call.1']
    #allocation10 [shape = 'u8[8192]{0}', space=vmem, size = 0x2000, scoped, tag = 'input window, operand 3, single buffered']
    #allocation11 [shape = 'u8[4096]{0}', space=vmem, size = 0x1000, scoped, tag = 'output window, operand 0, single buffered']
    %9 = vsyncpa [#allocation5], 0
    %10 = vsyncpa [#allocation6], 0
    %11 = vsyncpa [#allocation9], 0
    %12 = vsyncpa [#allocation3], 0
    %13 = vsyncpa [#allocation4], 0
    // Predicated region
    $region2: #{tpu_custom_call.1} parent=1 // pred_check
      _
    $region3: #{tpu_custom_call.1} parent=1 // pred_check_branch
      %15 = sbr.rel (0) target = $region5
    $region4: #{tpu_custom_call.1} parent=1 // pred_region
      %s17 = ssub.s32 16, 16
      %18 = vsyncadd [#allocation5], %s17
      %21 = dma.hbm_to_smem %s0, 16, [#allocation2], [#allocation5]
    $region5: #{tpu_custom_call.1} parent=1 // pred_fallthru
      _
    // Predicated region
    $region6: #{tpu_custom_call.1} parent=1 // pred_check
      _
    $region7: #{tpu_custom_call.1} parent=1 // pred_check_branch
      %23 = sbr.rel (0) target = $region9
    $region8: #{tpu_custom_call.1} parent=1 // pred_region
      %s25 = ssub.s32 16, 16
      %26 = vsyncadd [#allocation6], %s25
      %s28 = sshll.u32 %s1, 4
      %s29 = int_to_ptr.vmem [resolvable:$true] %s28
      %31 = dma.vmem_to_smem %s29, 16, [#allocation7], [#allocation6]
    $region9: #{tpu_custom_call.1} parent=1 // pred_fallthru
      _
    // Predicated region
    $region10: #{tpu_custom_call.1} parent=1 // pred_check
      _
    $region11: #{tpu_custom_call.1} parent=1 // pred_check_branch
      %33 = sbr.rel (0) target = $region13
    $region12: #{tpu_custom_call.1} parent=1 // pred_region
      %s35 = ssub.s32 16, 16
      %36 = vsyncadd [#allocation9], %s35
      %s38 = sshll.u32 %s2, 4
      %s39 = int_to_ptr.vmem [resolvable:$true] %s38
      %41 = dma.vmem_to_smem %s39, 16, [#allocation8], [#allocation9]
    $region13: #{tpu_custom_call.1} parent=1 // pred_fallthru
      _
    // Predicated region
    $region14: #{tpu_custom_call.1} parent=1 // pred_check
      _
    $region15: #{tpu_custom_call.1} parent=1 // pred_check_branch
      %43 = sbr.rel (0) target = $region17
    $region16: #{tpu_custom_call.1} parent=1 // pred_region
      %s45 = ssub.s32 256, 256
      %46 = vsyncadd [#allocation3], %s45
      %s47 = sshll.u32 [#allocation10], 4
      %s48 = int_to_ptr.vmem [resolvable:$true] %s47
      %53 = dma.hbm_to_vmem [thread:$0]  %s3, 256, %s48, [#allocation3], 128, 128, 8
    $region17: #{tpu_custom_call.1} parent=1 // pred_fallthru
      _
    // Predicated region
    $region18: #{tpu_custom_call.1} parent=1 // pred_check
      _
    $region19: #{tpu_custom_call.1} parent=1 // pred_check_branch
      %55 = sbr.rel (0) target = $region21
    $region20: #{tpu_custom_call.1} parent=1 // pred_region
      %56 = dma.done [#allocation5], 16
    $region21: #{tpu_custom_call.1} parent=1 // pred_fallthru
      _
    // Predicated region
    $region22: #{tpu_custom_call.1} parent=1 // pred_check
      _
    $region23: #{tpu_custom_call.1} parent=1 // pred_check_branch
      %58 = sbr.rel (0) target = $region25
    $region24: #{tpu_custom_call.1} parent=1 // pred_region
      %59 = dma.done [#allocation6], 16
    $region25: #{tpu_custom_call.1} parent=1 // pred_fallthru
      _
    // Predicated region
    $region26: #{tpu_custom_call.1} parent=1 // pred_check
      _
    $region27: #{tpu_custom_call.1} parent=1 // pred_check_branch
      %61 = sbr.rel (0) target = $region29
    $region28: #{tpu_custom_call.1} parent=1 // pred_region
      %62 = dma.done [#allocation9], 16
    $region29: #{tpu_custom_call.1} parent=1 // pred_fallthru
      _
    // Predicated region
    $region30: #{tpu_custom_call.1} parent=1 // pred_check
      _
    $region31: #{tpu_custom_call.1} parent=1 // pred_check_branch
      %64 = sbr.rel (0) target = $region33
    $region32: #{tpu_custom_call.1} parent=1 // pred_region
      %65 = dma.done [#allocation3], 256
    $region33: #{tpu_custom_call.1} parent=1 // pred_fallthru
      _
    %66 = sfence
    %v67 = vld [vmem:[#allocation10] sm:$0xff]
    %v68 = vmax.f32 %v67, -0.999999
    %v69 = vmin.f32 %v68, 0.999999
    %v70 = vadd.f32 %v69, 1.0
    %v71 = vlog2.pop %v70
    %v72 = vmul.f32 %v71, 0.6931472
    %v73 = vsub.f32 1.0, %v69
    %v74 = vlog2.pop %v73
    %v75 = vmul.f32 %v74, 0.6931472
    %v76 = vsub.f32 %v72, %v75
    %v77 = vmul.f32 %v76, 0.5
    %v78 = vadd.f32 %v72, %v75
    %s79 = scalar_lea.vmem [#allocation10], 8
    %v80 = vld [vmem:[%s79] sm:$0xff]
    %v81 = vmax.f32 %v80, -0.999999
    %v82 = vmin.f32 %v81, 0.999999
    %v83 = vadd.f32 %v82, 1.0
    %v84 = vlog2.pop %v83
    %v85 = vmul.f32 %v84, 0.6931472
    %v86 = vsub.f32 1.0, %v82
    %v87 = vlog2.pop %v86
    %v88 = vmul.f32 %v87, 0.6931472
    %v89 = vsub.f32 %v85, %v88
    %v90 = vmul.f32 %v89, 0.5
    %v91 = vadd.f32 %v85, %v88
    %v92 = vadd.f32 %v78, %v91
    %s93 = sld [smem:[#allocation7]]
    %v94 = vstv %s93
    %v95 = vsub.f32 %v77, %v94
    %s96 = sld [smem:[#allocation8]]
    %v97 = vstv %s96
    %v98 = vmul.f32 %v95, %v97
    %v99 = vmul.f32 %v98, %v98
    %s100 = sld [smem:[#allocation7 + $0x1]]
    %v101 = vstv %s100
    %v102 = vsub.f32 %v90, %v101
    %s103 = sld [smem:[#allocation8 + $0x1]]
    %v104 = vstv %s103
    %v105 = vmul.f32 %v102, %v104
    %v106 = vmul.f32 %v105, %v105
    %v107 = vadd.f32 %v99, %v106
    %s108 = sld [smem:[#allocation2]]
    %v109 = vmul.f32 %v107, 0.5
    %v110 = vstv %s108
    %v111 = vsub.f32 %v110, %v109
    %s112 = sld [smem:[#allocation7 + $0x2]]
    %v113 = vstv %s112
    %v114 = vsub.f32 %v77, %v113
    %s115 = sld [smem:[#allocation8 + $0x2]]
    %v116 = vstv %s115
    %v117 = vmul.f32 %v114, %v116
    %v118 = vmul.f32 %v117, %v117
    %s119 = sld [smem:[#allocation7 + $0x3]]
    %v120 = vstv %s119
    %v121 = vsub.f32 %v90, %v120
    %s122 = sld [smem:[#allocation8 + $0x3]]
    %v123 = vstv %s122
    %v124 = vmul.f32 %v121, %v123
    %v125 = vmul.f32 %v124, %v124
    %v126 = vadd.f32 %v118, %v125
    %s127 = sld [smem:[#allocation2 + $0x1]]
    %v128 = vmul.f32 %v126, 0.5
    %v129 = vstv %s127
    %v130 = vsub.f32 %v129, %v128
    %s131 = sld [smem:[#allocation7 + $0x4]]
    %v132 = vstv %s131
    %v133 = vsub.f32 %v77, %v132
    %s134 = sld [smem:[#allocation8 + $0x4]]
    %v135 = vstv %s134
    %v136 = vmul.f32 %v133, %v135
    %v137 = vmul.f32 %v136, %v136
    %s138 = sld [smem:[#allocation7 + $0x5]]
    %v139 = vstv %s138
    %v140 = vsub.f32 %v90, %v139
    %s141 = sld [smem:[#allocation8 + $0x5]]
    %v142 = vstv %s141
    %v143 = vmul.f32 %v140, %v142
    %v144 = vmul.f32 %v143, %v143
    %v145 = vadd.f32 %v137, %v144
    %s146 = sld [smem:[#allocation2 + $0x2]]
    %v147 = vmul.f32 %v145, 0.5
    %v148 = vstv %s146
    %v149 = vsub.f32 %v148, %v147
    %s150 = sld [smem:[#allocation7 + $0x6]]
    %v151 = vstv %s150
    %v152 = vsub.f32 %v77, %v151
    %s153 = sld [smem:[#allocation8 + $0x6]]
    %v154 = vstv %s153
    %v155 = vmul.f32 %v152, %v154
    %v156 = vmul.f32 %v155, %v155
    %s157 = sld [smem:[#allocation7 + $0x7]]
    %v158 = vstv %s157
    %v159 = vsub.f32 %v90, %v158
    %s160 = sld [smem:[#allocation8 + $0x7]]
    %v161 = vstv %s160
    %v162 = vmul.f32 %v159, %v161
    %v163 = vmul.f32 %v162, %v162
    %v164 = vadd.f32 %v156, %v163
    %s165 = sld [smem:[#allocation2 + $0x3]]
    %v166 = vmul.f32 %v164, 0.5
    %v167 = vstv %s165
    %v168 = vsub.f32 %v167, %v166
    %s169 = sld [smem:[#allocation7 + $0x8]]
    %v170 = vstv %s169
    %v171 = vsub.f32 %v77, %v170
    %s172 = sld [smem:[#allocation8 + $0x8]]
    %v173 = vstv %s172
    %v174 = vmul.f32 %v171, %v173
    %v175 = vmul.f32 %v174, %v174
    %s176 = sld [smem:[#allocation7 + $0x9]]
    %v177 = vstv %s176
    %v178 = vsub.f32 %v90, %v177
    %s179 = sld [smem:[#allocation8 + $0x9]]
    %v180 = vstv %s179
    %v181 = vmul.f32 %v178, %v180
    %v182 = vmul.f32 %v181, %v181
    %v183 = vadd.f32 %v175, %v182
    %s184 = sld [smem:[#allocation2 + $0x4]]
    %v185 = vmul.f32 %v183, 0.5
    %v186 = vstv %s184
    %v187 = vsub.f32 %v186, %v185
    %v188 = vmax.f32 %v111, %v130
    %v189 = vmax.f32 %v188, %v149
    %v190 = vmax.f32 %v189, %v168
    %v191 = vmax.f32 %v190, %v187
    %v192 = vsub.f32 %v111, %v191
    %v193 = vmul.f32 %v192, 1.442695
    %v194 = vpow.pop %v193
    %v195 = vsub.f32 %v130, %v191
    %v196 = vmul.f32 %v195, 1.442695
    %v197 = vpow.pop %v196
    %v198 = vadd.f32 %v194, %v197
    %v199 = vsub.f32 %v149, %v191
    %v200 = vmul.f32 %v199, 1.442695
    %v201 = vpow.pop %v200
    %v202 = vadd.f32 %v198, %v201
    %v203 = vsub.f32 %v168, %v191
    %v204 = vmul.f32 %v203, 1.442695
    %v205 = vpow.pop %v204
    %v206 = vadd.f32 %v202, %v205
    %v207 = vsub.f32 %v187, %v191
    %v208 = vmul.f32 %v207, 1.442695
    %v209 = vpow.pop %v208
    %v210 = vadd.f32 %v206, %v209
    %v211 = vlog2.pop %v210
    %v212 = vmul.f32 %v211, 0.6931472
    %v213 = vadd.f32 %v191, %v212
    %v214 = vsub.f32 %v213, %v92
    %215 = vst [vmem:[#allocation11] sm:$0xff] %v214
    // Predicated region
    $region34: #{tpu_custom_call.1} parent=1 // pred_check
      _
    $region35: #{tpu_custom_call.1} parent=1 // pred_check_branch
      %217 = sbr.rel (0) target = $region37
    $region36: #{tpu_custom_call.1} parent=1 // pred_region
      %s219 = ssub.s32 128, 128
      %220 = vsyncadd [#allocation4], %s219
      %s222 = sshll.u32 [#allocation11], 4
      %s223 = int_to_ptr.vmem [resolvable:$true] %s222
      %225 = dma.vmem_to_hbm [thread:$0]  %s223, 128, %s4, [#allocation4]
    $region37: #{tpu_custom_call.1} parent=1 // pred_fallthru
      _
    // Predicated region
    $region38: #{tpu_custom_call.1} parent=1 // pred_check
      _
    $region39: #{tpu_custom_call.1} parent=1 // pred_check_branch
      %227 = sbr.rel (0) target = $region41
    $region40: #{tpu_custom_call.1} parent=1 // pred_region
      %228 = dma.done [#allocation4], 128
    $region41: #{tpu_custom_call.1} parent=1 // pred_fallthru
      _
    %229 = vsyncpa [#allocation3], 1
    %230 = vsyncpa [#allocation4], 1
    %231 = vsyncpa [#allocation5], 1
    %232 = vsyncpa [#allocation6], 1
    %233 = vsyncpa [#allocation9], 1

</llo_original>
